<compile_context>
chip_gen: v7x
topology: tpu7x:2x2x1
jax: 0.10.0
libtpu: 0.0.40
codegen_flags: <defaults>
</compile_context>

<pallas_src>
import functools

import jax
import jax.numpy as jnp
from jax import lax
from jax.experimental import pallas as pl
from jax.experimental.pallas import tpu as pltpu

_LANE = 128
_SUBLANE = 8


def _round_up(x: int, m: int) -> int:
    return ((x + m - 1) // m) * m


def _cdiv(a: int, b: int) -> int:
    return -(-a // b)


def _make_mlp_kernel(num_layers: int, in_dim: int, d0_pad: int):
    """Fused MLP kernel for one batch tile.

    Kernel refs (in order): x, w0, b0, ..., w_{L-1}, b_{L-1}, out
      x:    (TB, in_dim)            raw input tile (unpadded feature width)
      w_i:  (d_i_pad, d_{i+1}_pad)  lane-padded weights (f32 or bf16), VMEM-resident
      b_i:  (1, d_{i+1}_pad)        lane-padded f32 bias row
      out:  (TB, d_last_pad)        lane-dense padded output tile
    leaky_relu (negative_slope=0.01) after every layer except the last.
    """

    def kernel(*refs):
        x_ref = refs[0]
        out_ref = refs[-1]
        param_refs = refs[1:-1]

        x = x_ref[...]                                   # (TB, in_dim) f32
        pad = d0_pad - in_dim
        if pad > 0:
            # Zero-pad to the lane-aligned width in registers — no VMEM scratch,
            # no store/reload round-trip. Zero lanes stay zero through every layer
            # (linear layers + leaky_relu(0) == 0), so padding is exact.
            h = jnp.concatenate(
                [x, jnp.zeros((x.shape[0], pad), x.dtype)], axis=-1)
        else:
            h = x

        for i in range(num_layers):
            w = param_refs[2 * i][...]
            b = param_refs[2 * i + 1][...]
            # Weights may be bf16 (hidden_size >= 256): cast only the matmul
            # operands, accumulate in f32; bias add / leaky_relu stay f32.
            h = jnp.dot(h.astype(w.dtype), w,
                        preferred_element_type=jnp.float32) + b
            if i < num_layers - 1:
                # F.leaky_relu, default negative_slope = 0.01
                h = jnp.where(h > 0, h, 0.01 * h)

        # Lane-dense store of the full padded width (unmasked vst, contiguous
        # writeback DMA); the wrapper slices out the real output column.
        out_ref[...] = h.astype(out_ref.dtype)

    return kernel


def pad_critic_params(params, compute_dtype=None):
    """Zero-pad weights/biases to lane-aligned shapes ONCE (outside the forward path).

    params: list of (w, b) with w: [in, out], b: [out]
    compute_dtype: dtype for the padded weights; defaults to bf16 when the widest
        layer is >= 256 (bf16-native MXU on v5e/v6e/v7x, halves weight VMEM/HBM
        traffic), f32 otherwise. Biases stay f32.
    Returns (flat list [w0_p, b0_p, w1_p, b1_p, ...], real out_dim).
    """
    dims = [params[0][0].shape[0]] + [w.shape[1] for (w, _) in params]
    dims_pad = [_round_up(max(d, _LANE), _LANE) for d in dims]
    if compute_dtype is None:
        compute_dtype = jnp.bfloat16 if max(dims) >= 256 else jnp.float32

    padded = []
    for i, (w, b) in enumerate(params):
        din, dout = w.shape
        w_p = (jnp.zeros((dims_pad[i], dims_pad[i + 1]), compute_dtype)
               .at[:din, :dout].set(w.astype(compute_dtype)))
        b_p = jnp.zeros((1, dims_pad[i + 1]), jnp.float32).at[0, :dout].set(b)
        padded += [w_p, b_p]
    return padded, params[-1][0].shape[1]


@functools.partial(jax.jit, static_argnames=("out_dim", "block_batch"))
def critic_forward_pallas(s_a, padded_params, out_dim=1, block_batch=1024):
    """Critic MLP forward pass as a single batch-tiled Pallas kernel.

    s_a:           [batch, state_dim + action_dim] float32 (unpadded)
    padded_params: flat tuple/list from pad_critic_params
    returns        [batch, out_dim] float32 (the Q-value, out_dim == 1).
    """
    batch, in_dim = s_a.shape
    num_layers = len(padded_params) // 2
    dims_pad = [padded_params[0].shape[0]] + [
        padded_params[2 * i].shape[1] for i in range(num_layers)
    ]
    out_pad = dims_pad[-1]

    # Batch tile: multiple of 8 sublanes, capped at block_batch rows, and capped
    # at ceil(batch/2) so the "parallel" grid axis has >= 2 steps when the batch
    # allows it (keeps both v7x TensorCores busy).
    block_batch = _round_up(max(int(block_batch), _SUBLANE), _SUBLANE)
    tb = min(block_batch, max(_SUBLANE, _round_up(_cdiv(batch, 2), _SUBLANE)))
    grid_b = _cdiv(batch, tb)

    # Activations / output are tiled over the batch grid; weights & biases use a
    # constant index_map so they stay resident in VMEM across all batch tiles.
    x_spec = pl.BlockSpec((tb, in_dim), lambda i: (i, 0))

    resident_param_bytes = sum(int(p.size) * p.dtype.itemsize for p in padded_params)
    # Constant-index blocks are still double-buffered by default; single-buffer
    # them when they are large enough to threaten VMEM (v7x has only 64 MiB).
    weight_spec_kwargs = {}
    if 2 * resident_param_bytes > (24 << 20):
        weight_spec_kwargs["pipeline_mode"] = pl.Buffered(1)

    param_specs = []
    for li in range(num_layers):
        param_specs.append(
            pl.BlockSpec((dims_pad[li], dims_pad[li + 1]), lambda i: (0, 0),
                         **weight_spec_kwargs))
        param_specs.append(
            pl.BlockSpec((1, dims_pad[li + 1]), lambda i: (0, 0),
                         **weight_spec_kwargs))
    out_spec = pl.BlockSpec((tb, out_pad), lambda i: (i, 0))

    flops = 2 * batch * sum(dims_pad[i] * dims_pad[i + 1] for i in range(num_layers))
    bytes_accessed = (4 * batch * in_dim + 4 * batch * out_pad + resident_param_bytes)
    cost = pl.CostEstimate(flops=flops, transcendentals=0,
                           bytes_accessed=bytes_accessed)

    # Raise the scoped-VMEM limit (instead of shrinking tiles) when the resident
    # weights + activations need more than the platform default.
    vmem_limit = int(min(max(2 * resident_param_bytes + 16 * tb * max(dims_pad)
                             + (8 << 20), 32 << 20), 100 << 20))

    kernel = _make_mlp_kernel(num_layers, in_dim, dims_pad[0])

    q_pad = pl.pallas_call(
        kernel,
        out_shape=jax.ShapeDtypeStruct((batch, out_pad), jnp.float32),
        grid_spec=pltpu.PrefetchScalarGridSpec(
            num_scalar_prefetch=0,
            grid=(grid_b,),
            in_specs=[x_spec] + param_specs,
            out_specs=out_spec,
        ),
        compiler_params=pltpu.CompilerParams(
            dimension_semantics=("parallel",),
            vmem_limit_bytes=vmem_limit,
        ),
        cost_estimate=cost,
    )(s_a, *padded_params)

    # Lane-dense HBM output; taking the real Q column here is free inside jit.
    return q_pad[:, :out_dim]


def init_critic_params(key, state_dim, action_dim, hidden_size, hidden_layers):
    """Deterministic init mimicking torch.nn.Linear default U(-1/sqrt(fan_in), 1/sqrt(fan_in))."""
    input_dim = state_dim + action_dim
    layer_dims = [(input_dim, hidden_size)]
    layer_dims += [(hidden_size, hidden_size) for _ in range(hidden_layers)]
    layer_dims += [(hidden_size, 1)]

    params = []
    for (din, dout) in layer_dims:
        key, kw, kb = jax.random.split(key, 3)
        bound = 1.0 / jnp.sqrt(jnp.float32(din))
        w = jax.random.uniform(kw, (din, dout), jnp.float32, -bound, bound)
        b = jax.random.uniform(kb, (dout,), jnp.float32, -bound, bound)
        params.append((w, b))
    return params


def critic_forward_ref(s_a, params):
    """Pure-JAX reference of Critic.forward for validation (highest-precision matmuls)."""
    h = s_a
    for i, (w, b) in enumerate(params):
        h = jnp.dot(h, w, precision=lax.Precision.HIGHEST) + b
        if i < len(params) - 1:
            h = jnp.where(h > 0, h, 0.01 * h)
    return h


if __name__ == "__main__":
    # Shapes consistent with the module: Critic(state_dim=3, action_dim=1,
    # hidden_size=16, hidden_layers=1) applied to a batch of (s, a) pairs.
    state_dim, action_dim = 3, 1
    hidden_size, hidden_layers = 16, 1

    key = jax.random.PRNGKey(0)
    key, k_in = jax.random.split(key)

    params = init_critic_params(key, state_dim, action_dim, hidden_size, hidden_layers)
    padded_params, out_dim = pad_critic_params(params)  # hoisted: done once, not per forward
    padded_params = tuple(padded_params)

    # TODO(synk): torch.Tensor(np.array(s_a)) host conversion and the Adam optimizer in
    #             setup_critic are training-time / host-side state, not part of the TPU forward.

    # Test 1: small batch, single grid step (f32 weight path).
    batch = 8
    s_a = jax.random.normal(k_in, (batch, state_dim + action_dim), jnp.float32)
    q = jax.block_until_ready(critic_forward_pallas(s_a, padded_params, out_dim=out_dim))
    q_ref = critic_forward_ref(s_a, params)
    assert q.shape == (batch, 1), q.shape
    assert jnp.allclose(q, q_ref, atol=1e-4, rtol=1e-4), (q, q_ref)

    # Test 2: multi-tile batch grid (exercises batch streaming, VMEM-resident weights
    # and the >=2-grid-step split used for v7x megacore).
    batch2 = 32
    key, k_in2 = jax.random.split(key)
    s_a2 = jax.random.normal(k_in2, (batch2, state_dim + action_dim), jnp.float32)
    q2 = jax.block_until_ready(
        critic_forward_pallas(s_a2, padded_params, out_dim=out_dim, block_batch=16)
    )
    q2_ref = critic_forward_ref(s_a2, params)
    assert q2.shape == (batch2, 1), q2.shape
    assert jnp.allclose(q2, q2_ref, atol=1e-4, rtol=1e-4), (q2, q2_ref)

    # Test 3: bf16 MXU path (hidden_size >= 256) with a ragged last batch tile.
    hidden_size3, hidden_layers3 = 256, 1
    key, k_p3, k_in3 = jax.random.split(key, 3)
    params3 = init_critic_params(k_p3, state_dim, action_dim, hidden_size3, hidden_layers3)
    padded_params3, out_dim3 = pad_critic_params(params3)  # auto-selects bf16 weights
    padded_params3 = tuple(padded_params3)
    batch3 = 24
    s_a3 = jax.random.normal(k_in3, (batch3, state_dim + action_dim), jnp.float32)
    q3 = jax.block_until_ready(
        critic_forward_pallas(s_a3, padded_params3, out_dim=out_dim3)
    )
    q3_ref = critic_forward_ref(s_a3, params3)
    assert q3.shape == (batch3, 1), q3.shape
    assert jnp.allclose(q3, q3_ref, atol=5e-2, rtol=5e-2), float(jnp.max(jnp.abs(q3 - q3_ref)))

    print("KERNEL_OK")
</pallas_src>

<mosaic_0001>
module attributes {stable_mosaic.version = 11 : i64} {
  func.func @kernel(%arg0: i32, %arg1: memref<8x4xf32, #tpu.memory_space<vmem>>, %arg2: memref<128x128xf32, #tpu.memory_space<vmem>>, %arg3: memref<1x128xf32, #tpu.memory_space<vmem>>, %arg4: memref<128x128xf32, #tpu.memory_space<vmem>>, %arg5: memref<1x128xf32, #tpu.memory_space<vmem>>, %arg6: memref<128x128xf32, #tpu.memory_space<vmem>>, %arg7: memref<1x128xf32, #tpu.memory_space<vmem>>, %arg8: memref<8x128xf32, #tpu.memory_space<vmem>>) attributes {dimension_semantics = [#tpu.dimension_semantics<parallel>], iteration_bounds = array<i64: 1>, scalar_prefetch = 0 : i64, scratch_operands = 0 : i64, tpu.core_type = #tpu.core_type<tc>, window_params = [{transform_indices = @transform_0, window_bounds = array<i64: 8, 4>}, {pipeline_mode = #tpu.pipeline_mode<synchronous>, transform_indices = @transform_1, window_bounds = array<i64: 128, 128>}, {pipeline_mode = #tpu.pipeline_mode<synchronous>, transform_indices = @transform_2, window_bounds = array<i64: 1, 128>}, {pipeline_mode = #tpu.pipeline_mode<synchronous>, transform_indices = @transform_3, window_bounds = array<i64: 128, 128>}, {pipeline_mode = #tpu.pipeline_mode<synchronous>, transform_indices = @transform_4, window_bounds = array<i64: 1, 128>}, {pipeline_mode = #tpu.pipeline_mode<synchronous>, transform_indices = @transform_5, window_bounds = array<i64: 128, 128>}, {pipeline_mode = #tpu.pipeline_mode<synchronous>, transform_indices = @transform_6, window_bounds = array<i64: 1, 128>}, {transform_indices = @transform_7, window_bounds = array<i64: 8, 128>}]} {
    %c0 = arith.constant 0 : index
    %c0_0 = arith.constant 0 : index
    %0 = vector.load %arg1[%c0, %c0_0] : memref<8x4xf32, #tpu.memory_space<vmem>>, vector<8x4xf32>
    %cst = arith.constant 0.000000e+00 : f32
    %1 = vector.broadcast %cst : f32 to vector<8x124xf32>
    %2 = tpu.concatenate %0, %1 in 1 : vector<8x4xf32>, vector<8x124xf32> -> vector<8x128xf32>
    %c0_1 = arith.constant 0 : index
    %c0_2 = arith.constant 0 : index
    %3 = vector.load %arg2[%c0_1, %c0_2] : memref<128x128xf32, #tpu.memory_space<vmem>>, vector<128x128xf32>
    %c0_3 = arith.constant 0 : index
    %c0_4 = arith.constant 0 : index
    %4 = vector.load %arg3[%c0_3, %c0_4] : memref<1x128xf32, #tpu.memory_space<vmem>>, vector<1x128xf32>
    %cst_5 = arith.constant dense<0.000000e+00> : vector<8x128xf32>
    %5 = tpu.matmul %2, %3, %cst_5 {dimension_numbers = #tpu.dot_dimension_numbers<[1], [0], [0], [1], [0, 0, 1, 1], [], []>} : vector<8x128xf32>, vector<128x128xf32>, vector<8x128xf32> -> vector<8x128xf32>
    %6 = vector.broadcast %4 : vector<1x128xf32> to vector<8x128xf32>
    %7 = arith.addf %5, %6 : vector<8x128xf32>
    %cst_6 = arith.constant 0.000000e+00 : f32
    %8 = vector.broadcast %cst_6 : f32 to vector<8x128xf32>
    %9 = arith.cmpf ogt, %7, %8 : vector<8x128xf32>
    %cst_7 = arith.constant 0.00999999977 : f32
    %10 = vector.broadcast %cst_7 : f32 to vector<8x128xf32>
    %11 = arith.mulf %10, %7 : vector<8x128xf32>
    %12 = arith.select %9, %7, %11 : vector<8x128xi1>, vector<8x128xf32>
    %c0_8 = arith.constant 0 : index
    %c0_9 = arith.constant 0 : index
    %13 = vector.load %arg4[%c0_8, %c0_9] : memref<128x128xf32, #tpu.memory_space<vmem>>, vector<128x128xf32>
    %c0_10 = arith.constant 0 : index
    %c0_11 = arith.constant 0 : index
    %14 = vector.load %arg5[%c0_10, %c0_11] : memref<1x128xf32, #tpu.memory_space<vmem>>, vector<1x128xf32>
    %cst_12 = arith.constant dense<0.000000e+00> : vector<8x128xf32>
    %15 = tpu.matmul %12, %13, %cst_12 {dimension_numbers = #tpu.dot_dimension_numbers<[1], [0], [0], [1], [0, 0, 1, 1], [], []>} : vector<8x128xf32>, vector<128x128xf32>, vector<8x128xf32> -> vector<8x128xf32>
    %16 = vector.broadcast %14 : vector<1x128xf32> to vector<8x128xf32>
    %17 = arith.addf %15, %16 : vector<8x128xf32>
    %cst_13 = arith.constant 0.000000e+00 : f32
    %18 = vector.broadcast %cst_13 : f32 to vector<8x128xf32>
    %19 = arith.cmpf ogt, %17, %18 : vector<8x128xf32>
    %cst_14 = arith.constant 0.00999999977 : f32
    %20 = vector.broadcast %cst_14 : f32 to vector<8x128xf32>
    %21 = arith.mulf %20, %17 : vector<8x128xf32>
    %22 = arith.select %19, %17, %21 : vector<8x128xi1>, vector<8x128xf32>
    %c0_15 = arith.constant 0 : index
    %c0_16 = arith.constant 0 : index
    %23 = vector.load %arg6[%c0_15, %c0_16] : memref<128x128xf32, #tpu.memory_space<vmem>>, vector<128x128xf32>
    %c0_17 = arith.constant 0 : index
    %c0_18 = arith.constant 0 : index
    %24 = vector.load %arg7[%c0_17, %c0_18] : memref<1x128xf32, #tpu.memory_space<vmem>>, vector<1x128xf32>
    %cst_19 = arith.constant dense<0.000000e+00> : vector<8x128xf32>
    %25 = tpu.matmul %22, %23, %cst_19 {dimension_numbers = #tpu.dot_dimension_numbers<[1], [0], [0], [1], [0, 0, 1, 1], [], []>} : vector<8x128xf32>, vector<128x128xf32>, vector<8x128xf32> -> vector<8x128xf32>
    %26 = vector.broadcast %24 : vector<1x128xf32> to vector<8x128xf32>
    %27 = arith.addf %25, %26 : vector<8x128xf32>
    %c0_20 = arith.constant 0 : index
    %c0_21 = arith.constant 0 : index
    %28 = vector.load %arg8[%c0_20, %c0_21] : memref<8x128xf32, #tpu.memory_space<vmem>>, vector<8x128xf32>
    tpu.vector_store %arg8[%c0_20, %c0_21], %27 {strides = array<i32>} : memref<8x128xf32, #tpu.memory_space<vmem>>, vector<8x128xf32>,
    return
  }
  func.func @transform_0(%arg0: i32) -> (i32, i32) {
    %c0_i32 = arith.constant 0 : i32
    %c0_i32_0 = arith.constant 0 : i32
    return %arg0, %c0_i32 : i32, i32
  }
  func.func @transform_1(%arg0: i32) -> (i32, i32) {
    %c0_i32 = arith.constant 0 : i32
    %c0_i32_0 = arith.constant 0 : i32
    %c0_i32_1 = arith.constant 0 : i32
    return %c0_i32, %c0_i32_0 : i32, i32
  }
  func.func @transform_2(%arg0: i32) -> (i32, i32) {
    %c0_i32 = arith.constant 0 : i32
    %c0_i32_0 = arith.constant 0 : i32
    %c0_i32_1 = arith.constant 0 : i32
    return %c0_i32, %c0_i32_0 : i32, i32
  }
  func.func @transform_3(%arg0: i32) -> (i32, i32) {
    %c0_i32 = arith.constant 0 : i32
    %c0_i32_0 = arith.constant 0 : i32
    %c0_i32_1 = arith.constant 0 : i32
    return %c0_i32, %c0_i32_0 : i32, i32
  }
  func.func @transform_4(%arg0: i32) -> (i32, i32) {
    %c0_i32 = arith.constant 0 : i32
    %c0_i32_0 = arith.constant 0 : i32
    %c0_i32_1 = arith.constant 0 : i32
    return %c0_i32, %c0_i32_0 : i32, i32
  }
  func.func @transform_5(%arg0: i32) -> (i32, i32) {
    %c0_i32 = arith.constant 0 : i32
    %c0_i32_0 = arith.constant 0 : i32
    %c0_i32_1 = arith.constant 0 : i32
    return %c0_i32, %c0_i32_0 : i32, i32
  }
  func.func @transform_6(%arg0: i32) -> (i32, i32) {
    %c0_i32 = arith.constant 0 : i32
    %c0_i32_0 = arith.constant 0 : i32
    %c0_i32_1 = arith.constant 0 : i32
    return %c0_i32, %c0_i32_0 : i32, i32
  }
  func.func @transform_7(%arg0: i32) -> (i32, i32) {
    %c0_i32 = arith.constant 0 : i32
    %c0_i32_0 = arith.constant 0 : i32
    return %arg0, %c0_i32 : i32, i32
  }
}

</mosaic_0001>

<llo_original>
// kernel: critic_forward_pallas.1
$region0: #{critic_forward_pallas.1}
  #allocation0 [shape = 'u32[]', space=smem, size = 0x4, offset = 0x4, fixed_abs, tag = 'smem constant byte address 0x4 - core index']
  #allocation1 [shape = 'u32[144,128]{1,0:T(1,128)}', space=vmem, size = 0x12000, scoped, tag = 'internal scratch']
  %s0 = inlined_call_operand.vmem [shape: f32[8,4], index: 0, kind: input, shape index: {}]
  %s1 = inlined_call_operand.hbm [shape: f32[128,128], index: 1, kind: input, shape index: {}]
  %s2 = inlined_call_operand.vmem [shape: f32[1,128], index: 2, kind: input, shape index: {}]
  %s3 = inlined_call_operand.hbm [shape: f32[128,128], index: 3, kind: input, shape index: {}]
  %s4 = inlined_call_operand.vmem [shape: f32[1,128], index: 4, kind: input, shape index: {}]
  %s5 = inlined_call_operand.hbm [shape: f32[128,128], index: 5, kind: input, shape index: {}]
  %s6 = inlined_call_operand.vmem [shape: f32[1,128], index: 6, kind: input, shape index: {}]
  %s7 = inlined_call_operand.vmem [shape: f32[8,128], index: 7, kind: output, shape index: {}]
  %s8 = sld [smem:[#allocation0]]
  $region50: #{critic_forward_pallas.1} parent=0
    _
  %s10 = ssub.s32 1, %s8
  %s11 = scalar_select 0, %s10, %s8
  $region1: #{critic_forward_pallas.1} parent=0
    #allocation2 [shape = 'u8[65536]{0}', space=vmem, size = 0x10000, scoped, tag = 'input window, operand 1, single buffered']
    #allocation3 [shape = 's32[1]{0}', space=sflag, size = 0x4, scoped, tag = 'scoped memory for critic_forward_pallas.1']
    #allocation4 [shape = 'u8[65536]{0}', space=vmem, size = 0x10000, scoped, tag = 'input window, operand 3, single buffered']
    #allocation5 [shape = 's32[1]{0}', space=sflag, size = 0x4, scoped, tag = 'scoped memory for critic_forward_pallas.1']
    #allocation6 [shape = 'u8[65536]{0}', space=vmem, size = 0x10000, scoped, tag = 'input window, operand 5, single buffered']
    %12 = vsyncpa [#allocation3], 0
    %13 = vsyncpa [#allocation5], 0
    // Predicated region
    $region2: #{critic_forward_pallas.1} parent=1 // pred_check
      _
    $region3: #{critic_forward_pallas.1} parent=1 // pred_check_branch
      %15 = sbr.rel (0) target = $region5
    $region4: #{critic_forward_pallas.1} parent=1 // pred_region
      _
    $region5: #{critic_forward_pallas.1} parent=1 // pred_fallthru
      _
    // Predicated region
    $region6: #{critic_forward_pallas.1} parent=1 // pred_check
      _
    $region7: #{critic_forward_pallas.1} parent=1 // pred_check_branch
      %17 = sbr.rel (0) target = $region9
    $region8: #{critic_forward_pallas.1} parent=1 // pred_region
      %s19 = ssub.s32 2048, 2048
      %20 = vsyncadd [#allocation3], %s19
      %s21 = sshll.u32 [#allocation2], 4
      %s22 = int_to_ptr.vmem [resolvable:$true] %s21
      %27 = dma.hbm_to_vmem [thread:$0]  %s1, 2048, %s22, [#allocation3], 128, 128, 8
    $region9: #{critic_forward_pallas.1} parent=1 // pred_fallthru
      _
    // Predicated region
    $region10: #{critic_forward_pallas.1} parent=1 // pred_check
      _
    $region11: #{critic_forward_pallas.1} parent=1 // pred_check_branch
      %29 = sbr.rel (0) target = $region13
    $region12: #{critic_forward_pallas.1} parent=1 // pred_region
      _
    $region13: #{critic_forward_pallas.1} parent=1 // pred_fallthru
      _
    // Predicated region
    $region14: #{critic_forward_pallas.1} parent=1 // pred_check
      _
    $region15: #{critic_forward_pallas.1} parent=1 // pred_check_branch
      %31 = sbr.rel (0) target = $region17
    $region16: #{critic_forward_pallas.1} parent=1 // pred_region
      %s33 = ssub.s32 2048, 2048
      %34 = vsyncadd [#allocation5], %s33
      %s35 = sshll.u32 [#allocation4], 4
      %s36 = int_to_ptr.vmem [resolvable:$true] %s35
      %41 = dma.hbm_to_vmem [thread:$0]  %s3, 2048, %s36, [#allocation5], 128, 128, 8
    $region17: #{critic_forward_pallas.1} parent=1 // pred_fallthru
      _
    // Predicated region
    $region18: #{critic_forward_pallas.1} parent=1 // pred_check
      _
    $region19: #{critic_forward_pallas.1} parent=1 // pred_check_branch
      %43 = sbr.rel (0) target = $region21
    $region20: #{critic_forward_pallas.1} parent=1 // pred_region
      _
    $region21: #{critic_forward_pallas.1} parent=1 // pred_fallthru
      _
    // Predicated region
    $region22: #{critic_forward_pallas.1} parent=1 // pred_check
      _
    $region23: #{critic_forward_pallas.1} parent=1 // pred_check_branch
      %45 = sbr.rel (0) target = $region25
    $region24: #{critic_forward_pallas.1} parent=1 // pred_region
      %s47 = ssub.s32 2048, 2048
      %48 = vsyncadd [#allocation5], %s47
      %s49 = sshll.u32 [#allocation6], 4
      %s50 = int_to_ptr.vmem [resolvable:$true] %s49
      %55 = dma.hbm_to_vmem [thread:$0]  %s5, 2048, %s50, [#allocation5], 128, 128, 8
    $region25: #{critic_forward_pallas.1} parent=1 // pred_fallthru
      _
    // Predicated region
    $region26: #{critic_forward_pallas.1} parent=1 // pred_check
      _
    $region27: #{critic_forward_pallas.1} parent=1 // pred_check_branch
      %57 = sbr.rel (0) target = $region29
    $region28: #{critic_forward_pallas.1} parent=1 // pred_region
      _
    $region29: #{critic_forward_pallas.1} parent=1 // pred_fallthru
      _
    // Predicated region
    $region30: #{critic_forward_pallas.1} parent=1 // pred_check
      _
    $region31: #{critic_forward_pallas.1} parent=1 // pred_check_branch
      %59 = sbr.rel (0) target = $region33
    $region32: #{critic_forward_pallas.1} parent=1 // pred_region
      %60 = dma.done [#allocation3], 2048
    $region33: #{critic_forward_pallas.1} parent=1 // pred_fallthru
      _
    // Predicated region
    $region34: #{critic_forward_pallas.1} parent=1 // pred_check
      _
    $region35: #{critic_forward_pallas.1} parent=1 // pred_check_branch
      %62 = sbr.rel (0) target = $region37
    $region36: #{critic_forward_pallas.1} parent=1 // pred_region
      %63 = dma.done [#allocation5], 2048
    $region37: #{critic_forward_pallas.1} parent=1 // pred_fallthru
      _
    // Predicated region
    $region38: #{critic_forward_pallas.1} parent=1 // pred_check
      _
    $region39: #{critic_forward_pallas.1} parent=1 // pred_check_branch
      %65 = sbr.rel (0) target = $region41
    $region40: #{critic_forward_pallas.1} parent=1 // pred_region
      %66 = dma.done [#allocation5], 2048
    $region41: #{critic_forward_pallas.1} parent=1 // pred_fallthru
      _
    %v67 = vld [vmem:[%s0] sm:$0xff]
    %vm68 = vcmask 31744
    %v69 = vsel %vm68, %v67, 0.0
    %v70 = vld [vmem:[#allocation2] sm:$0xff]
    %v71 = vld [vmem:[#allocation2 + $0x8] sm:$0xff]
    %v72 = vld [vmem:[#allocation2 + $0x10] sm:$0xff]
    %v73 = vld [vmem:[#allocation2 + $0x18] sm:$0xff]
    %v74 = vld [vmem:[#allocation2 + $0x20] sm:$0xff]
    %v75 = vld [vmem:[#allocation2 + $0x28] sm:$0xff]
    %v76 = vld [vmem:[#allocation2 + $0x30] sm:$0xff]
    %v77 = vld [vmem:[#allocation2 + $0x38] sm:$0xff]
    %v78 = vld [vmem:[#allocation2 + $0x40] sm:$0xff]
    %v79 = vld [vmem:[#allocation2 + $0x48] sm:$0xff]
    %v80 = vld [vmem:[#allocation2 + $0x50] sm:$0xff]
    %v81 = vld [vmem:[#allocation2 + $0x58] sm:$0xff]
    %v82 = vld [vmem:[#allocation2 + $0x60] sm:$0xff]
    %v83 = vld [vmem:[#allocation2 + $0x68] sm:$0xff]
    %v84 = vld [vmem:[#allocation2 + $0x70] sm:$0xff]
    %v85 = vld [vmem:[#allocation2 + $0x78] sm:$0xff]
    %v86 = vld [vmem:[%s2] sm:$0x1]
    %v88 = vlaneseq
    %v89 = vshrl.u32 %v88, 7
    %v90 = vsub.s32 0, %v89
    %v91 = vrot.slane %v86, %v90
    %93 = vmatprep.subr.mxu0 0.0
    %94 = vmatpush1.msra.mxu0 %v70
    %95 = vmatprep.subr.mxu0 0.0
    %96 = vmatpush1.msra.mxu0 %v71
    %97 = vmatprep.subr.mxu0 0.0
    %98 = vmatpush1.msra.mxu0 %v72
    %99 = vmatprep.subr.mxu0 0.0
    %100 = vmatpush1.msra.mxu0 %v73
    %101 = vmatprep.subr.mxu0 0.0
    %102 = vmatpush1.msra.mxu0 %v74
    %103 = vmatprep.subr.mxu0 0.0
    %104 = vmatpush1.msra.mxu0 %v75
    %105 = vmatprep.subr.mxu0 0.0
    %106 = vmatpush1.msra.mxu0 %v76
    %107 = vmatprep.subr.mxu0 0.0
    %108 = vmatpush1.msra.mxu0 %v77
    %109 = vmatprep.subr.mxu0 0.0
    %110 = vmatpush1.msra.mxu0 %v78
    %111 = vmatprep.subr.mxu0 0.0
    %112 = vmatpush1.msra.mxu0 %v79
    %113 = vmatprep.subr.mxu0 0.0
    %114 = vmatpush1.msra.mxu0 %v80
    %115 = vmatprep.subr.mxu0 0.0
    %116 = vmatpush1.msra.mxu0 %v81
    %117 = vmatprep.subr.mxu0 0.0
    %118 = vmatpush1.msra.mxu0 %v82
    %119 = vmatprep.subr.mxu0 0.0
    %120 = vmatpush1.msra.mxu0 %v83
    %121 = vmatprep.subr.mxu0 0.0
    %122 = vmatpush1.msra.mxu0 %v84
    %123 = vmatprep.subr.mxu0 0.0
    %124 = vmatpush1.msra.mxu0 %v85
    %125 = vmatprep.subr.mxu0 0.0
    %126 = vmatpush1.msra.mxu0 0.0
    %127 = vmatprep.subr.mxu0 0.0
    %128 = vmatpush1.msra.mxu0 0.0
    %129 = vmatprep.subr.mxu0 0.0
    %130 = vmatpush1.msra.mxu0 0.0
    %131 = vmatprep.subr.mxu0 0.0
    %132 = vmatpush1.msra.mxu0 0.0
    %133 = vmatprep.subr.mxu0 0.0
    %134 = vmatpush1.msra.mxu0 0.0
    %135 = vmatprep.subr.mxu0 0.0
    %136 = vmatpush1.msra.mxu0 0.0
    %137 = vmatprep.subr.mxu0 0.0
    %138 = vmatpush1.msra.mxu0 0.0
    %139 = vmatprep.subr.mxu0 0.0
    %140 = vmatpush1.msra.mxu0 0.0
    %141 = vmatprep.subr.mxu0 0.0
    %142 = vmatpush1.msra.mxu0 0.0
    %143 = vmatprep.subr.mxu0 0.0
    %144 = vmatpush1.msra.mxu0 0.0
    %145 = vmatprep.subr.mxu0 0.0
    %146 = vmatpush1.msra.mxu0 0.0
    %147 = vmatprep.subr.mxu0 0.0
    %148 = vmatpush1.msra.mxu0 0.0
    %149 = vmatprep.subr.mxu0 0.0
    %150 = vmatpush1.msra.mxu0 0.0
    %151 = vmatprep.subr.mxu0 0.0
    %152 = vmatpush1.msra.mxu0 0.0
    %153 = vmatprep.subr.mxu0 0.0
    %154 = vmatpush1.msra.mxu0 0.0
    %155 = vmatprep.subr.mxu0 0.0
    %156 = vmatpush1.msra.mxu0 0.0
    %157 = vmatprep.mubr.f32.mxu0 0.0
    %158 = vmatmul.mubr.f32.gmra.mrb[0].mxu0 %v69
    %v159 = vpop.f32.mrb[0].mxu0
    %v160 = vadd.f32 %v91, %v159
    %v161 = vpop.f32.mrb[0].mxu0
    %162 = vdwg.mxu0
    %vm163 = vcmp.gt.f32.partialorder %v160, 0.0
    %v164 = vmul.f32 %v160, 0.01
    %v165 = vsel %vm163, %v160, %v164
    %v166 = vld [vmem:[#allocation4] sm:$0xff]
    %v167 = vld [vmem:[#allocation4 + $0x8] sm:$0xff]
    %v168 = vld [vmem:[#allocation4 + $0x10] sm:$0xff]
    %v169 = vld [vmem:[#allocation4 + $0x18] sm:$0xff]
    %v170 = vld [vmem:[#allocation4 + $0x20] sm:$0xff]
    %v171 = vld [vmem:[#allocation4 + $0x28] sm:$0xff]
    %v172 = vld [vmem:[#allocation4 + $0x30] sm:$0xff]
    %v173 = vld [vmem:[#allocation4 + $0x38] sm:$0xff]
    %v174 = vld [vmem:[#allocation4 + $0x40] sm:$0xff]
    %v175 = vld [vmem:[#allocation4 + $0x48] sm:$0xff]
    %v176 = vld [vmem:[#allocation4 + $0x50] sm:$0xff]
    %v177 = vld [vmem:[#allocation4 + $0x58] sm:$0xff]
    %v178 = vld [vmem:[#allocation4 + $0x60] sm:$0xff]
    %v179 = vld [vmem:[#allocation4 + $0x68] sm:$0xff]
    %v180 = vld [vmem:[#allocation4 + $0x70] sm:$0xff]
    %v181 = vld [vmem:[#allocation4 + $0x78] sm:$0xff]
    %v182 = vld [vmem:[%s4] sm:$0x1]
    %v184 = vlaneseq
    %v185 = vshrl.u32 %v184, 7
    %v186 = vsub.s32 0, %v185
    %v187 = vrot.slane %v182, %v186
    %189 = vmatprep.subr.mxu0 0.0
    %190 = vmatpush1.msra.mxu0 %v166
    %191 = vmatprep.subr.mxu0 0.0
    %192 = vmatpush1.msra.mxu0 %v167
    %193 = vmatprep.subr.mxu0 0.0
    %194 = vmatpush1.msra.mxu0 %v168
    %195 = vmatprep.subr.mxu0 0.0
    %196 = vmatpush1.msra.mxu0 %v169
    %197 = vmatprep.subr.mxu0 0.0
    %198 = vmatpush1.msra.mxu0 %v170
    %199 = vmatprep.subr.mxu0 0.0
    %200 = vmatpush1.msra.mxu0 %v171
    %201 = vmatprep.subr.mxu0 0.0
    %202 = vmatpush1.msra.mxu0 %v172
    %203 = vmatprep.subr.mxu0 0.0
    %204 = vmatpush1.msra.mxu0 %v173
    %205 = vmatprep.subr.mxu0 0.0
    %206 = vmatpush1.msra.mxu0 %v174
    %207 = vmatprep.subr.mxu0 0.0
    %208 = vmatpush1.msra.mxu0 %v175
    %209 = vmatprep.subr.mxu0 0.0
    %210 = vmatpush1.msra.mxu0 %v176
    %211 = vmatprep.subr.mxu0 0.0
    %212 = vmatpush1.msra.mxu0 %v177
    %213 = vmatprep.subr.mxu0 0.0
    %214 = vmatpush1.msra.mxu0 %v178
    %215 = vmatprep.subr.mxu0 0.0
    %216 = vmatpush1.msra.mxu0 %v179
    %217 = vmatprep.subr.mxu0 0.0
    %218 = vmatpush1.msra.mxu0 %v180
    %219 = vmatprep.subr.mxu0 0.0
    %220 = vmatpush1.msra.mxu0 %v181
    %221 = vmatprep.subr.mxu0 0.0
    %222 = vmatpush1.msra.mxu0 0.0
    %223 = vmatprep.subr.mxu0 0.0
    %224 = vmatpush1.msra.mxu0 0.0
    %225 = vmatprep.subr.mxu0 0.0
    %226 = vmatpush1.msra.mxu0 0.0
    %227 = vmatprep.subr.mxu0 0.0
    %228 = vmatpush1.msra.mxu0 0.0
    %229 = vmatprep.subr.mxu0 0.0
    %230 = vmatpush1.msra.mxu0 0.0
    %231 = vmatprep.subr.mxu0 0.0
    %232 = vmatpush1.msra.mxu0 0.0
    %233 = vmatprep.subr.mxu0 0.0
    %234 = vmatpush1.msra.mxu0 0.0
    %235 = vmatprep.subr.mxu0 0.0
    %236 = vmatpush1.msra.mxu0 0.0
    %237 = vmatprep.subr.mxu0 0.0
    %238 = vmatpush1.msra.mxu0 0.0
    %239 = vmatprep.subr.mxu0 0.0
    %240 = vmatpush1.msra.mxu0 0.0
    %241 = vmatprep.subr.mxu0 0.0
    %242 = vmatpush1.msra.mxu0 0.0
    %243 = vmatprep.subr.mxu0 0.0
    %244 = vmatpush1.msra.mxu0 0.0
    %245 = vmatprep.subr.mxu0 0.0
    %246 = vmatpush1.msra.mxu0 0.0
    %247 = vmatprep.subr.mxu0 0.0
    %248 = vmatpush1.msra.mxu0 0.0
    %249 = vmatprep.subr.mxu0 0.0
    %250 = vmatpush1.msra.mxu0 0.0
    %251 = vmatprep.subr.mxu0 0.0
    %252 = vmatpush1.msra.mxu0 0.0
    %253 = vmatprep.mubr.f32.mxu0 0.0
    %254 = vmatmul.mubr.f32.gmra.mrb[0].mxu0 %v165
    %v255 = vpop.f32.mrb[0].mxu0
    %v256 = vadd.f32 %v187, %v255
    %v257 = vpop.f32.mrb[0].mxu0
    %258 = vdwg.mxu0
    %vm259 = vcmp.gt.f32.partialorder %v256, 0.0
    %v260 = vmul.f32 %v256, 0.01
    %v261 = vsel %vm259, %v256, %v260
    %v262 = vld [vmem:[#allocation6] sm:$0xff]
    %v263 = vld [vmem:[#allocation6 + $0x8] sm:$0xff]
    %v264 = vld [vmem:[#allocation6 + $0x10] sm:$0xff]
    %v265 = vld [vmem:[#allocation6 + $0x18] sm:$0xff]
    %v266 = vld [vmem:[#allocation6 + $0x20] sm:$0xff]
    %v267 = vld [vmem:[#allocation6 + $0x28] sm:$0xff]
    %v268 = vld [vmem:[#allocation6 + $0x30] sm:$0xff]
    %v269 = vld [vmem:[#allocation6 + $0x38] sm:$0xff]
    %v270 = vld [vmem:[#allocation6 + $0x40] sm:$0xff]
    %v271 = vld [vmem:[#allocation6 + $0x48] sm:$0xff]
    %v272 = vld [vmem:[#allocation6 + $0x50] sm:$0xff]
    %v273 = vld [vmem:[#allocation6 + $0x58] sm:$0xff]
    %v274 = vld [vmem:[#allocation6 + $0x60] sm:$0xff]
    %v275 = vld [vmem:[#allocation6 + $0x68] sm:$0xff]
    %v276 = vld [vmem:[#allocation6 + $0x70] sm:$0xff]
    %v277 = vld [vmem:[#allocation6 + $0x78] sm:$0xff]
    %v278 = vld [vmem:[%s6] sm:$0x1]
    %v280 = vlaneseq
    %v281 = vshrl.u32 %v280, 7
    %v282 = vsub.s32 0, %v281
    %v283 = vrot.slane %v278, %v282
    %285 = vmatprep.subr.mxu0 0.0
    %286 = vmatpush1.msra.mxu0 %v262
    %287 = vmatprep.subr.mxu0 0.0
    %288 = vmatpush1.msra.mxu0 %v263
    %289 = vmatprep.subr.mxu0 0.0
    %290 = vmatpush1.msra.mxu0 %v264
    %291 = vmatprep.subr.mxu0 0.0
    %292 = vmatpush1.msra.mxu0 %v265
    %293 = vmatprep.subr.mxu0 0.0
    %294 = vmatpush1.msra.mxu0 %v266
    %295 = vmatprep.subr.mxu0 0.0
    %296 = vmatpush1.msra.mxu0 %v267
    %297 = vmatprep.subr.mxu0 0.0
    %298 = vmatpush1.msra.mxu0 %v268
    %299 = vmatprep.subr.mxu0 0.0
    %300 = vmatpush1.msra.mxu0 %v269
    %301 = vmatprep.subr.mxu0 0.0
    %302 = vmatpush1.msra.mxu0 %v270
    %303 = vmatprep.subr.mxu0 0.0
    %304 = vmatpush1.msra.mxu0 %v271
    %305 = vmatprep.subr.mxu0 0.0
    %306 = vmatpush1.msra.mxu0 %v272
    %307 = vmatprep.subr.mxu0 0.0
    %308 = vmatpush1.msra.mxu0 %v273
    %309 = vmatprep.subr.mxu0 0.0
    %310 = vmatpush1.msra.mxu0 %v274
    %311 = vmatprep.subr.mxu0 0.0
    %312 = vmatpush1.msra.mxu0 %v275
    %313 = vmatprep.subr.mxu0 0.0
    %314 = vmatpush1.msra.mxu0 %v276
    %315 = vmatprep.subr.mxu0 0.0
    %316 = vmatpush1.msra.mxu0 %v277
    %317 = vmatprep.subr.mxu0 0.0
    %318 = vmatpush1.msra.mxu0 0.0
    %319 = vmatprep.subr.mxu0 0.0
    %320 = vmatpush1.msra.mxu0 0.0
    %321 = vmatprep.subr.mxu0 0.0
    %322 = vmatpush1.msra.mxu0 0.0
    %323 = vmatprep.subr.mxu0 0.0
    %324 = vmatpush1.msra.mxu0 0.0
    %325 = vmatprep.subr.mxu0 0.0
    %326 = vmatpush1.msra.mxu0 0.0
    %327 = vmatprep.subr.mxu0 0.0
    %328 = vmatpush1.msra.mxu0 0.0
    %329 = vmatprep.subr.mxu0 0.0
    %330 = vmatpush1.msra.mxu0 0.0
    %331 = vmatprep.subr.mxu0 0.0
    %332 = vmatpush1.msra.mxu0 0.0
    %333 = vmatprep.subr.mxu0 0.0
    %334 = vmatpush1.msra.mxu0 0.0
    %335 = vmatprep.subr.mxu0 0.0
    %336 = vmatpush1.msra.mxu0 0.0
    %337 = vmatprep.subr.mxu0 0.0
    %338 = vmatpush1.msra.mxu0 0.0
    %339 = vmatprep.subr.mxu0 0.0
    %340 = vmatpush1.msra.mxu0 0.0
    %341 = vmatprep.subr.mxu0 0.0
    %342 = vmatpush1.msra.mxu0 0.0
    %343 = vmatprep.subr.mxu0 0.0
    %344 = vmatpush1.msra.mxu0 0.0
    %345 = vmatprep.subr.mxu0 0.0
    %346 = vmatpush1.msra.mxu0 0.0
    %347 = vmatprep.subr.mxu0 0.0
    %348 = vmatpush1.msra.mxu0 0.0
    %349 = vmatprep.mubr.f32.mxu0 0.0
    %350 = vmatmul.mubr.f32.gmra.mrb[0].mxu0 %v261
    %v351 = vpop.f32.mrb[0].mxu0
    %v352 = vadd.f32 %v283, %v351
    %v353 = vpop.f32.mrb[0].mxu0
    %354 = vdwg.mxu0
    %355 = vst [vmem:[%s7] sm:$0xff] %v352
    // Predicated region
    $region42: #{critic_forward_pallas.1} parent=1 // pred_check
      _
    $region43: #{critic_forward_pallas.1} parent=1 // pred_check_branch
      %357 = sbr.rel (0) target = $region45
    $region44: #{critic_forward_pallas.1} parent=1 // pred_region
      _
    $region45: #{critic_forward_pallas.1} parent=1 // pred_fallthru
      _
    // Predicated region
    $region46: #{critic_forward_pallas.1} parent=1 // pred_check
      _
    $region47: #{critic_forward_pallas.1} parent=1 // pred_check_branch
      %359 = sbr.rel (0) target = $region49
    $region48: #{critic_forward_pallas.1} parent=1 // pred_region
      _
    $region49: #{critic_forward_pallas.1} parent=1 // pred_fallthru
      _
    %360 = vsyncpa [#allocation3], 1
    %361 = vsyncpa [#allocation5], 1

</llo_original>
